<compile_context>
chip_gen: v6e
topology: v6e:2x2x1
jax: 0.10.0
libtpu: 0.0.40
codegen_flags: <defaults>
</compile_context>

<pallas_src>
import functools

import jax
import jax.numpy as jnp
from jax.experimental import pallas as pl
from jax.experimental.pallas import tpu as pltpu


def _sublayer_connection_kernel(x_ref, a2_ref, b2_ref, w_ref, bias_ref, o_ref,
                                *, eps, d_feat, tn):
    # ---- LayerNorm over the FULL feature axis (x block is (tm, D)) ----
    x = x_ref[...].astype(jnp.float32)                                 # (tm, D)
    mean = jnp.mean(x, axis=-1, keepdims=True)                         # (tm, 1)
    centered = x - mean
    var_unbiased = jnp.sum(centered * centered, axis=-1, keepdims=True) / (d_feat - 1)
    std = jnp.sqrt(var_unbiased)
    # reciprocal-multiply on the EUP instead of a full (tm, D) VALU divide
    inv = pl.reciprocal(std + eps, approx=True)                        # (tm, 1)

    a2 = a2_ref[...].astype(jnp.float32)                               # (1, D)
    b2 = b2_ref[...].astype(jnp.float32)                               # (1, D)
    ln = a2 * (centered * inv) + b2                                    # (tm, D)

    # ---- sublayer Linear: (tm, D) x (D, tn) on the MXU, bf16 in / f32 acc ----
    sub = jnp.dot(ln.astype(w_ref.dtype), w_ref[...],
                  preferred_element_type=jnp.float32)                  # (tm, tn)
    sub = sub + bias_ref[...].astype(jnp.float32)

    # ---- dropout (eval mode == identity) + residual on this column tile ----
    if tn == d_feat:
        x_res = x                                                      # single column tile
    else:
        j = pl.program_id(0)                                           # column axis is OUTER
        col = j * tn
        if tn % 128 == 0:
            col = pl.multiple_of(col, 128)                             # lane-aligned slice
        x_res = x_ref[:, pl.ds(col, tn)].astype(jnp.float32)
    o_ref[...] = (x_res + sub).astype(o_ref.dtype)


def _pick_row_tile(rows, tm_req):
    """Largest multiple of 8 that divides rows and is <= tm_req (None if rows % 8 != 0)."""
    if rows % 8 != 0:
        return None
    t = min((max(tm_req, 8) // 8) * 8, rows)
    while t >= 8:
        if rows % t == 0:
            return t
        t -= 8
    return 8


def _largest_fitting_divisor(d, mult, max_bytes, elem_bytes):
    """Largest t with t % mult == 0, d % t == 0, 2*d*t*elem_bytes <= max_bytes."""
    if d % mult != 0:
        return None
    t = (d // mult) * mult
    while t >= mult:
        if d % t == 0 and 2 * d * t * elem_bytes <= max_bytes:
            return t
        t -= mult
    return None


def sublayer_connection(x, a2, b2, w, bias, *, eps=1e-6, tm=None, tn=None,
                        mxu_dtype=jnp.bfloat16):
    """x: [B, S, D]; a2,b2: [D]; w: [D, D]; bias: [D]. Returns [B, S, D].

    out = x + Linear(LayerNorm_annotated(x))   (dropout in eval mode == identity)

    LayerNorm is the Annotated-Transformer variant (unbiased std, eps added to
    std) -- do NOT expect bit-parity with torch.nn.LayerNorm weights.
    The matmul operands are fed to the MXU in `mxu_dtype` (bf16 by default)
    with f32 accumulation; LN / residual math stays f32.
    """
    B, S, D = x.shape
    rows = B * S
    x2 = x.reshape(rows, D)

    x_bytes = jnp.dtype(x.dtype).itemsize
    w_mxu = w.astype(mxu_dtype)
    w_bytes = jnp.dtype(mxu_dtype).itemsize

    # ---- VMEM capacity: 128 MiB (v5e/v6e) or 64 MiB (v7x); conservative fallback ----
    try:
        vmem_cap = int(getattr(pltpu.get_tpu_info(), "vmem_capacity_bytes",
                               64 * 1024 * 1024))
    except Exception:
        vmem_cap = 64 * 1024 * 1024
    budget = int(vmem_cap * 0.85)                     # headroom for Mosaic internals

    # Per-row-tile footprint: double-buffered x/out blocks + the (tm, D) f32
    # intermediates (x, centered, ln, sub, casts) the kernel materializes.
    def _row_bytes(tm_, tn_):
        return 2 * tm_ * D * x_bytes + 2 * tm_ * tn_ * x_bytes + 6 * tm_ * D * 4

    # ---- row tile: largest sublane-aligned divisor of rows (avoids jnp.pad) ----
    tm_req = tm if tm is not None else (512 if vmem_cap >= 96 * 1024 * 1024 else 256)
    tm_req = max(8, min(tm_req, rows))
    # shrink tm (not tn) first if the row-tile working set eats > half the budget
    while tm_req > 8 and _row_bytes(tm_req, min(D, 512)) > budget // 2:
        tm_req //= 2
    tm_req = max(tm_req, 8)

    tm_eff = _pick_row_tile(rows, tm_req)
    pad_rows = 0
    if tm_eff is None:
        # rows not a multiple of 8: fall back to padding (rare).
        # TODO(synk): in-kernel masked tail store would avoid this extra HBM pass.
        tm_eff = (tm_req // 8) * 8 or 8
        pad_rows = pl.cdiv(rows, tm_eff) * tm_eff - rows
        x2 = jnp.pad(x2, ((0, pad_rows), (0, 0)))
    tm = tm_eff
    rows_p = rows + pad_rows

    # ---- column tile of weight/output ----
    weight_budget = max(budget - _row_bytes(tm, min(D, 512)), 4 * 1024 * 1024)
    if tn is None:
        if 2 * D * D * w_bytes <= weight_budget:
            tn = D                                    # weight resident, loaded once
        else:
            # 256-multiples first (256x256 MXU on v6e/v7x), then 128-multiples.
            tn = (_largest_fitting_divisor(D, 256, weight_budget, w_bytes)
                  or _largest_fitting_divisor(D, 128, weight_budget, w_bytes)
                  or D)                               # no lane-aligned divisor of D
    else:
        tn = min(tn, D)
        if D % tn != 0:
            raise ValueError(f"tn={tn} must divide D={D}")

    # Column-OUTER grid: weight block index depends only on the outer axis j, so
    # each (D, tn) weight column is DMA'd exactly once; x row blocks re-stream
    # D/tn times (D/tn == 1 on the resident-weight path).
    grid = (D // tn, rows_p // tm)

    # ---- VMEM limit: actual estimate, capped by physical-capacity headroom ----
    est = (_row_bytes(tm, tn) + 2 * D * tn * w_bytes
           + 2 * 3 * D * 4 + 2 * tn * 4)
    vmem_limit = min(max(int(est * 1.25), 32 * 1024 * 1024), budget)

    kernel = functools.partial(_sublayer_connection_kernel,
                               eps=eps, d_feat=D, tn=tn)

    out = pl.pallas_call(
        kernel,
        out_shape=jax.ShapeDtypeStruct((rows_p, D), x.dtype),
        grid_spec=pltpu.PrefetchScalarGridSpec(
            num_scalar_prefetch=0,
            grid=grid,
            in_specs=[
                pl.BlockSpec((tm, D), lambda j, i: (i, 0)),    # x rows (full D for LN + residual)
                pl.BlockSpec((1, D), lambda j, i: (0, 0)),     # a_2 (gain)
                pl.BlockSpec((1, D), lambda j, i: (0, 0)),     # b_2 (bias)
                pl.BlockSpec((D, tn), lambda j, i: (0, j)),    # weight column (streams once)
                pl.BlockSpec((1, tn), lambda j, i: (0, j)),    # sublayer bias column
            ],
            out_specs=pl.BlockSpec((tm, tn), lambda j, i: (i, j)),
        ),
        compiler_params=pltpu.CompilerParams(
            # row axis parallel -> megacore sharding on v7x; column axis stays
            # arbitrary (keep it that way if an LN cache scratch is ever added).
            dimension_semantics=("arbitrary", "parallel"),
            vmem_limit_bytes=vmem_limit),
    )(x2, a2.reshape(1, D), b2.reshape(1, D), w_mxu, bias.reshape(1, D))

    if pad_rows:
        out = out[:rows]
    return out.reshape(B, S, D)


def _reference(x, a2, b2, w, bias, eps=1e-6):
    xf = x.astype(jnp.float32)
    mean = xf.mean(-1, keepdims=True)
    d = x.shape[-1]
    std = jnp.sqrt(((xf - mean) ** 2).sum(-1, keepdims=True) / (d - 1))
    ln = a2 * (xf - mean) / (std + eps) + b2
    sub = ln @ w.astype(jnp.float32) + bias
    return (xf + sub).astype(x.dtype)


if __name__ == "__main__":
    key = jax.random.PRNGKey(0)

    # --- Test 1: default auto-tiling path (weight resident, tn == D) ---
    B, S, D = 2, 256, 128
    kx, kw, kb = jax.random.split(key, 3)
    x = jax.random.normal(kx, (B, S, D), dtype=jnp.float32)
    a2 = jnp.ones((D,), dtype=jnp.float32)          # nn.Parameter(ones)
    b2 = jnp.zeros((D,), dtype=jnp.float32)         # nn.Parameter(zeros)
    w = jax.random.normal(kw, (D, D), dtype=jnp.float32) * 0.05
    bias = jax.random.normal(kb, (D,), dtype=jnp.float32) * 0.01

    y = sublayer_connection(x, a2, b2, w, bias)
    jax.block_until_ready(y)
    y_ref = _reference(x, a2, b2, w, bias)
    # tolerance covers bf16 MXU inputs + EUP approximate reciprocal in the LN
    assert jnp.allclose(y, y_ref, atol=3e-2, rtol=3e-2), "mismatch (resident-weight path)"

    # --- Test 2: forced column tiling (col-outer grid, weight streamed once) ---
    B2, S2, D2 = 2, 64, 256
    kx2, kw2, kb2 = jax.random.split(jax.random.PRNGKey(1), 3)
    x_t = jax.random.normal(kx2, (B2, S2, D2), dtype=jnp.float32)
    a2_t = jnp.ones((D2,), dtype=jnp.float32)
    b2_t = jnp.zeros((D2,), dtype=jnp.float32)
    w_t = jax.random.normal(kw2, (D2, D2), dtype=jnp.float32) * 0.05
    bias_t = jax.random.normal(kb2, (D2,), dtype=jnp.float32) * 0.01

    y_t = sublayer_connection(x_t, a2_t, b2_t, w_t, bias_t, tm=64, tn=128)
    jax.block_until_ready(y_t)
    y_t_ref = _reference(x_t, a2_t, b2_t, w_t, bias_t)
    assert jnp.allclose(y_t, y_t_ref, atol=3e-2, rtol=3e-2), "mismatch (column-tiled path)"

    print("KERNEL_OK")
</pallas_src>

<mosaic_0001>
module attributes {stable_mosaic.version = 11 : i64} {
  func.func @_sublayer_connection_kernel(%arg0: i32, %arg1: i32, %arg2: memref<256x128xf32, #tpu.memory_space<vmem>>, %arg3: memref<1x128xf32, #tpu.memory_space<vmem>>, %arg4: memref<1x128xf32, #tpu.memory_space<vmem>>, %arg5: memref<128x128xbf16, #tpu.memory_space<vmem>>, %arg6: memref<1x128xf32, #tpu.memory_space<vmem>>, %arg7: memref<256x128xf32, #tpu.memory_space<vmem>>) attributes {dimension_semantics = [#tpu.dimension_semantics<arbitrary>, #tpu.dimension_semantics<parallel>], iteration_bounds = array<i64: 1, 2>, scalar_prefetch = 0 : i64, scratch_operands = 0 : i64, tpu.core_type = #tpu.core_type<tc>, window_params = [{transform_indices = @transform_0, window_bounds = array<i64: 256, 128>}, {pipeline_mode = #tpu.pipeline_mode<synchronous>, transform_indices = @transform_1, window_bounds = array<i64: 1, 128>}, {pipeline_mode = #tpu.pipeline_mode<synchronous>, transform_indices = @transform_2, window_bounds = array<i64: 1, 128>}, {transform_indices = @transform_3, window_bounds = array<i64: 128, 128>}, {transform_indices = @transform_4, window_bounds = array<i64: 1, 128>}, {transform_indices = @transform_5, window_bounds = array<i64: 256, 128>}]} {
    %c0 = arith.constant 0 : index
    %c0_0 = arith.constant 0 : index
    %0 = vector.load %arg2[%c0, %c0_0] : memref<256x128xf32, #tpu.memory_space<vmem>>, vector<256x128xf32>
    %cst = arith.constant dense<0.000000e+00> : vector<256xf32>
    %1 = vector.multi_reduction <add>, %0, %cst [1] : vector<256x128xf32> to vector<256xf32>
    %2 = vector.shape_cast %1 : vector<256xf32> to vector<256x1xf32>
    %cst_1 = arith.constant 1.280000e+02 : f32
    %3 = vector.broadcast %cst_1 : f32 to vector<256x1xf32>
    %4 = arith.divf %2, %3 : vector<256x1xf32>
    %5 = vector.broadcast %4 : vector<256x1xf32> to vector<256x128xf32>
    %6 = arith.subf %0, %5 : vector<256x128xf32>
    %7 = arith.mulf %6, %6 : vector<256x128xf32>
    %cst_2 = arith.constant dense<0.000000e+00> : vector<256xf32>
    %8 = vector.multi_reduction <add>, %7, %cst_2 [1] : vector<256x128xf32> to vector<256xf32>
    %9 = vector.shape_cast %8 : vector<256xf32> to vector<256x1xf32>
    %cst_3 = arith.constant 1.270000e+02 : f32
    %10 = vector.broadcast %cst_3 : f32 to vector<256x1xf32>
    %11 = arith.divf %9, %10 : vector<256x1xf32>
    %12 = math.sqrt %11 : vector<256x1xf32>
    %cst_4 = arith.constant 9.99999997E-7 : f32
    %13 = vector.broadcast %cst_4 : f32 to vector<256x1xf32>
    %14 = arith.addf %12, %13 : vector<256x1xf32>
    %15 = tpu.reciprocal %14 {approx = true} : vector<256x1xf32> -> vector<256x1xf32>
    %c0_5 = arith.constant 0 : index
    %c0_6 = arith.constant 0 : index
    %16 = vector.load %arg3[%c0_5, %c0_6] : memref<1x128xf32, #tpu.memory_space<vmem>>, vector<1x128xf32>
    %c0_7 = arith.constant 0 : index
    %c0_8 = arith.constant 0 : index
    %17 = vector.load %arg4[%c0_7, %c0_8] : memref<1x128xf32, #tpu.memory_space<vmem>>, vector<1x128xf32>
    %18 = vector.broadcast %15 : vector<256x1xf32> to vector<256x128xf32>
    %19 = arith.mulf %6, %18 : vector<256x128xf32>
    %20 = vector.broadcast %16 : vector<1x128xf32> to vector<256x128xf32>
    %21 = arith.mulf %20, %19 : vector<256x128xf32>
    %22 = vector.broadcast %17 : vector<1x128xf32> to vector<256x128xf32>
    %23 = arith.addf %21, %22 : vector<256x128xf32>
    %24 = arith.truncf %23 : vector<256x128xf32> to vector<256x128xbf16>
    %c0_9 = arith.constant 0 : index
    %c0_10 = arith.constant 0 : index
    %25 = vector.load %arg5[%c0_9, %c0_10] : memref<128x128xbf16, #tpu.memory_space<vmem>>, vector<128x128xbf16>
    %cst_11 = arith.constant dense<0.000000e+00> : vector<256x128xf32>
    %26 = tpu.matmul %24, %25, %cst_11 {dimension_numbers = #tpu.dot_dimension_numbers<[1], [0], [0], [1], [0, 0, 1, 1], [], []>} : vector<256x128xbf16>, vector<128x128xbf16>, vector<256x128xf32> -> vector<256x128xf32>
    %c0_12 = arith.constant 0 : index
    %c0_13 = arith.constant 0 : index
    %27 = vector.load %arg6[%c0_12, %c0_13] : memref<1x128xf32, #tpu.memory_space<vmem>>, vector<1x128xf32>
    %28 = vector.broadcast %27 : vector<1x128xf32> to vector<256x128xf32>
    %29 = arith.addf %26, %28 : vector<256x128xf32>
    %30 = arith.addf %0, %29 : vector<256x128xf32>
    %c0_14 = arith.constant 0 : index
    %c0_15 = arith.constant 0 : index
    %31 = vector.load %arg7[%c0_14, %c0_15] : memref<256x128xf32, #tpu.memory_space<vmem>>, vector<256x128xf32>
    tpu.vector_store %arg7[%c0_14, %c0_15], %30 {strides = array<i32>} : memref<256x128xf32, #tpu.memory_space<vmem>>, vector<256x128xf32>,
    return
  }
  func.func @transform_0(%arg0: i32, %arg1: i32) -> (i32, i32) {
    %c0_i32 = arith.constant 0 : i32
    %c0_i32_0 = arith.constant 0 : i32
    return %arg1, %c0_i32 : i32, i32
  }
  func.func @transform_1(%arg0: i32, %arg1: i32) -> (i32, i32) {
    %c0_i32 = arith.constant 0 : i32
    %c0_i32_0 = arith.constant 0 : i32
    %c0_i32_1 = arith.constant 0 : i32
    return %c0_i32, %c0_i32_0 : i32, i32
  }
  func.func @transform_2(%arg0: i32, %arg1: i32) -> (i32, i32) {
    %c0_i32 = arith.constant 0 : i32
    %c0_i32_0 = arith.constant 0 : i32
    %c0_i32_1 = arith.constant 0 : i32
    return %c0_i32, %c0_i32_0 : i32, i32
  }
  func.func @transform_3(%arg0: i32, %arg1: i32) -> (i32, i32) {
    %c0_i32 = arith.constant 0 : i32
    %c0_i32_0 = arith.constant 0 : i32
    return %c0_i32, %arg0 : i32, i32
  }
  func.func @transform_4(%arg0: i32, %arg1: i32) -> (i32, i32) {
    %c0_i32 = arith.constant 0 : i32
    %c0_i32_0 = arith.constant 0 : i32
    return %c0_i32, %arg0 : i32, i32
  }
  func.func @transform_5(%arg0: i32, %arg1: i32) -> (i32, i32) {
    %c0_i32 = arith.constant 0 : i32
    return %arg1, %arg0 : i32, i32
  }
}

</mosaic_0001>

<llo_original>
// kernel: tpu_custom_call.1
$region0: #{tpu_custom_call.1}
  #allocation0 [shape = 'u32[]', space=smem, size = 0x4, offset = 0x4, fixed_abs, tag = 'smem constant byte address 0x4 - core index']
  #allocation1 [shape = 'u32[144,128]{1,0:T(1,128)}', space=vmem, size = 0x12000, scoped, tag = 'internal scratch']
  %s0 = inlined_call_operand.hbm [shape: f32[512,128], index: 0, kind: input, shape index: {}]
  %s1 = inlined_call_operand.vmem [shape: f32[1,128], index: 1, kind: input, shape index: {}]
  %s2 = inlined_call_operand.vmem [shape: f32[1,128], index: 2, kind: input, shape index: {}]
  %s3 = inlined_call_operand.hbm [shape: bf16[128,128], index: 3, kind: input, shape index: {}]
  %s4 = inlined_call_operand.vmem [shape: f32[1,128], index: 4, kind: input, shape index: {}]
  %s5 = inlined_call_operand.hbm [shape: f32[512,128], index: 5, kind: output, shape index: {}]
  %s6 = sld [smem:[#allocation0]]
  $region61: #{tpu_custom_call.1} parent=0
    _
  %s8 = ssub.s32 1, %s6
  %s9 = scalar_select 0, %s8, %s6
  $region1: #{tpu_custom_call.1} parent=0
    #allocation2 [shape = 'u8[262144]{0}', space=vmem, size = 0x40000, scoped, tag = 'input window, operand 0']
    #allocation3 [shape = 's32[2]{0}', space=sflag, size = 0x8, scoped, tag = 'scoped memory for tpu_custom_call.1']
    #allocation4 [shape = 's32[2]{0}', space=sflag, size = 0x8, scoped, tag = 'scoped memory for tpu_custom_call.1']
    #allocation5 [shape = 'u8[32768]{0}', space=vmem, size = 0x8000, scoped, tag = 'input window, operand 3, single buffered']
    #allocation6 [shape = 's32[1]{0}', space=sflag, size = 0x4, scoped, tag = 'scoped memory for tpu_custom_call.1']
    #allocation7 [shape = 'u8[262144]{0}', space=vmem, size = 0x40000, scoped, tag = 'output window, operand 0']
    %10 = vsyncpa [#allocation3], 0
    %s11 = scalar_lea.sflag [#allocation3], 1
    %12 = vsyncpa %s11, 0
    %13 = vsyncpa [#allocation6], 0
    %14 = vsyncpa [#allocation4], 0
    %s15 = scalar_lea.sflag [#allocation4], 1
    %16 = vsyncpa %s15, 0
    loop: start=0, step=1, limit=4
    $region2: #{tpu_custom_call.1} parent=1 // loop_pre_header
      _
    $region3: #{tpu_custom_call.1} parent=1 // loop_header
      %s18 = sphi 0, %s22
      %p19 = scmp.ge.s32.totalorder %s18, 4
      %s25 = sphi 0, %s37
      %s26 = sphi 0, %s33
      %s27 = sphi 0, %s25
      %s28 = sphi 0, %s26
      %s29 = sphi 0, %s27
      %s30 = sphi 0, %s28
      %s40 = sphi 0, %s42
      %s43 = sphi 0, %s40
      %s44 = sphi 0, %s43
      %s60 = sphi 0, %s44
      %s64 = sphi 0, %s64
      %s66 = sphi 0, %s64
      %s67 = sphi 0, %s66
      %s81 = sphi 0, %s67
      %s85 = sphi 0, %s85
      %s87 = sphi 0, %s85
      %s88 = sphi 0, %s87
      %s102 = sphi 0, %s88
      %s108 = sphi 0, %s110
      %s111 = sphi 0, %s108
      %s112 = sphi 0, %s111
      %s128 = sphi 0, %s112
      %s134 = sphi 0, %s136
      %s137 = sphi 0, %s134
      %s138 = sphi 0, %s137
      %s154 = sphi 0, %s138
      %s162 = sphi 0, %s164
      %s165 = sphi 0, %s162
      %s166 = sphi 0, %s165
      %s182 = sphi 0, %s166
    $region4: #{tpu_custom_call.1} parent=1 // loop_header_branch
      %21 = sbr.rel (%p19) target = $region8
    $region5: #{tpu_custom_call.1} parent=1 // loop_body
      %s23 = ssub.s32 %s18, 1
      %s24 = ssub.s32 %s18, 2
      %s31 = sadd.s32 1, %s26
      %p32 = scmp.ge.s32.totalorder %s31, 2
      %s33 = scalar_select %p32, 0, %s31
      %s34 = sadd.s32 1, %s25
      %s35 = scalar_select %p32, %s34, %s25
      %p36 = scmp.ge.s32.totalorder %s35, 1
      %s37 = scalar_select %p36, 0, %s35
      %s38 = ssub.s32 %s26, %s33
      %p39 = scmp.eq.s32.totalorder %s38, 0
      %s41 = sadd.s32 %s40, 1
      %s42 = scalar_select %p39, %s40, %s41
      %p45 = pneg %p39
      %p46 = scmp.eq.s32.totalorder %s18, 1
      %p47 = por %p45, %p46
      %p48 = scmp.ne.s32.totalorder %s40, %s43
      %p49 = scmp.eq.s32.totalorder %s18, 0
      %p50 = por %p48, %p49
      %p51 = scmp.ne.s32.totalorder %s40, %s43
      %p52 = scmp.eq.s32.totalorder %s23, 1
      %p53 = por %p51, %p52
      %p54 = scmp.ne.s32.totalorder %s43, %s44
      %p55 = scmp.eq.s32.totalorder %s23, 0
      %p56 = por %p54, %p55
      %p57 = scmp.ne.s32.totalorder %s43, %s44
      %p58 = scmp.eq.s32.totalorder %s24, 1
      %p59 = por %p57, %p58
      %p61 = scmp.ne.s32.totalorder %s44, %s60
      %p62 = scmp.eq.s32.totalorder %s24, 0
      %p63 = por %p61, %p62
      %s65 = sadd.s32 %s64, 1
      %p68 = scmp.eq.s32.totalorder %s18, 1
      %p69 = scmp.ne.s32.totalorder %s64, %s66
      %p70 = scmp.eq.s32.totalorder %s18, 0
      %p71 = por %p69, %p70
      %p72 = scmp.ne.s32.totalorder %s64, %s66
      %p73 = scmp.eq.s32.totalorder %s23, 1
      %p74 = por %p72, %p73
      %p75 = scmp.ne.s32.totalorder %s66, %s67
      %p76 = scmp.eq.s32.totalorder %s23, 0
      %p77 = por %p75, %p76
      %p78 = scmp.ne.s32.totalorder %s66, %s67
      %p79 = scmp.eq.s32.totalorder %s24, 1
      %p80 = por %p78, %p79
      %p82 = scmp.ne.s32.totalorder %s67, %s81
      %p83 = scmp.eq.s32.totalorder %s24, 0
      %p84 = por %p82, %p83
      %s86 = sadd.s32 %s85, 1
      %p89 = scmp.eq.s32.totalorder %s18, 1
      %p90 = scmp.ne.s32.totalorder %s85, %s87
      %p91 = scmp.eq.s32.totalorder %s18, 0
      %p92 = por %p90, %p91
      %p93 = scmp.ne.s32.totalorder %s85, %s87
      %p94 = scmp.eq.s32.totalorder %s23, 1
      %p95 = por %p93, %p94
      %p96 = scmp.ne.s32.totalorder %s87, %s88
      %p97 = scmp.eq.s32.totalorder %s23, 0
      %p98 = por %p96, %p97
      %p99 = scmp.ne.s32.totalorder %s87, %s88
      %p100 = scmp.eq.s32.totalorder %s24, 1
      %p101 = por %p99, %p100
      %p103 = scmp.ne.s32.totalorder %s88, %s102
      %p104 = scmp.eq.s32.totalorder %s24, 0
      %p105 = por %p103, %p104
      %s106 = ssub.s32 %s25, %s37
      %p107 = scmp.eq.s32.totalorder %s106, 0
      %s109 = sadd.s32 %s108, 1
      %s110 = scalar_select %p107, %s108, %s109
      %p113 = pneg %p107
      %p114 = scmp.eq.s32.totalorder %s18, 1
      %p115 = por %p113, %p114
      %p116 = scmp.ne.s32.totalorder %s108, %s111
      %p117 = scmp.eq.s32.totalorder %s18, 0
      %p118 = por %p116, %p117
      %p119 = scmp.ne.s32.totalorder %s108, %s111
      %p120 = scmp.eq.s32.totalorder %s23, 1
      %p121 = por %p119, %p120
      %p122 = scmp.ne.s32.totalorder %s111, %s112
      %p123 = scmp.eq.s32.totalorder %s23, 0
      %p124 = por %p122, %p123
      %p125 = scmp.ne.s32.totalorder %s111, %s112
      %p126 = scmp.eq.s32.totalorder %s24, 1
      %p127 = por %p125, %p126
      %p129 = scmp.ne.s32.totalorder %s112, %s128
      %p130 = scmp.eq.s32.totalorder %s24, 0
      %p131 = por %p129, %p130
      %s132 = ssub.s32 %s25, %s37
      %p133 = scmp.eq.s32.totalorder %s132, 0
      %s135 = sadd.s32 %s134, 1
      %s136 = scalar_select %p133, %s134, %s135
      %p139 = pneg %p133
      %p140 = scmp.eq.s32.totalorder %s18, 1
      %p141 = por %p139, %p140
      %p142 = scmp.ne.s32.totalorder %s134, %s137
      %p143 = scmp.eq.s32.totalorder %s18, 0
      %p144 = por %p142, %p143
      %p145 = scmp.ne.s32.totalorder %s134, %s137
      %p146 = scmp.eq.s32.totalorder %s23, 1
      %p147 = por %p145, %p146
      %p148 = scmp.ne.s32.totalorder %s137, %s138
      %p149 = scmp.eq.s32.totalorder %s23, 0
      %p150 = por %p148, %p149
      %p151 = scmp.ne.s32.totalorder %s137, %s138
      %p152 = scmp.eq.s32.totalorder %s24, 1
      %p153 = por %p151, %p152
      %p155 = scmp.ne.s32.totalorder %s138, %s154
      %p156 = scmp.eq.s32.totalorder %s24, 0
      %p157 = por %p155, %p156
      %s158 = ssub.s32 %s26, %s33
      %s159 = ssub.s32 %s25, %s37
      %s160 = sor.u32 %s158, %s159
      %p161 = scmp.eq.s32.totalorder %s160, 0
      %s163 = sadd.s32 %s162, 1
      %s164 = scalar_select %p161, %s162, %s163
      %p167 = pneg %p161
      %p168 = scmp.eq.s32.totalorder %s18, 1
      %p169 = por %p167, %p168
      %p170 = scmp.ne.s32.totalorder %s162, %s165
      %p171 = scmp.eq.s32.totalorder %s18, 0
      %p172 = por %p170, %p171
      %p173 = scmp.ne.s32.totalorder %s162, %s165
      %p174 = scmp.eq.s32.totalorder %s23, 1
      %p175 = por %p173, %p174
      %p176 = scmp.ne.s32.totalorder %s165, %s166
      %p177 = scmp.eq.s32.totalorder %s23, 0
      %p178 = por %p176, %p177
      %p179 = scmp.ne.s32.totalorder %s165, %s166
      %p180 = scmp.eq.s32.totalorder %s24, 1
      %p181 = por %p179, %p180
      %p183 = scmp.ne.s32.totalorder %s166, %s182
      %p184 = scmp.eq.s32.totalorder %s24, 0
      %p185 = por %p183, %p184
      %p186 = scmp.le.s32.totalorder 1, %s18
      %p187 = scmp.lt.s32.totalorder %s18, 3
      %p188 = pnand %p186, %p187
      %p189 = pneg %p188
      // Predicated region
      $region9: #{tpu_custom_call.1} parent=5 // pred_check
        _
      $region10: #{tpu_custom_call.1} parent=5 // pred_check_branch
        %191 = sbr.rel (%p188) target = $region12
      $region11: #{tpu_custom_call.1} parent=5 // pred_region
        %s192 = ssub.s32 %s18, 1
        // Predicated region
        $region13: #{tpu_custom_call.1} parent=11 // pred_check
          %p193 = pneg %p77
        $region14: #{tpu_custom_call.1} parent=11 // pred_check_branch
          %195 = sbr.rel (%p193) target = $region16
        $region15: #{tpu_custom_call.1} parent=11 // pred_region
          _
        $region16: #{tpu_custom_call.1} parent=11 // pred_fallthru
          _
        // Predicated region
        $region17: #{tpu_custom_call.1} parent=11 // pred_check
          %p196 = pneg %p98
        $region18: #{tpu_custom_call.1} parent=11 // pred_check_branch
          %198 = sbr.rel (%p196) target = $region20
        $region19: #{tpu_custom_call.1} parent=11 // pred_region
          _
        $region20: #{tpu_custom_call.1} parent=11 // pred_fallthru
          _
        // Predicated region
        $region21: #{tpu_custom_call.1} parent=11 // pred_check
          %p199 = pneg %p124
        $region22: #{tpu_custom_call.1} parent=11 // pred_check_branch
          %201 = sbr.rel (%p199) target = $region24
        $region23: #{tpu_custom_call.1} parent=11 // pred_region
          %s203 = ssub.s32 1024, 1024
          %204 = vsyncadd [#allocation6], %s203
          %s205 = smul.addr %s27, 64
          %s206 = scalar_lea.hbm %s3, %s205
          %s207 = sshll.u32 [#allocation5], 4
          %s208 = int_to_ptr.vmem [resolvable:$true] %s207
          %213 = dma.hbm_to_vmem [thread:$0]  %s206, 1024, %s208, [#allocation6], 64, 64, 4
        $region24: #{tpu_custom_call.1} parent=11 // pred_fallthru
          _
        // Predicated region
        $region25: #{tpu_custom_call.1} parent=11 // pred_check
          %p214 = pneg %p150
        $region26: #{tpu_custom_call.1} parent=11 // pred_check_branch
          %216 = sbr.rel (%p214) target = $region28
        $region27: #{tpu_custom_call.1} parent=11 // pred_region
          %p217 = scmp.lt.s32.totalorder %s27, 0
          %s218 = scalar_select %p217, %s27, 0
          %s219 = scalar_lea.vmem %s4, %s218
        $region28: #{tpu_custom_call.1} parent=11 // pred_fallthru
          _
      $region12: #{tpu_custom_call.1} parent=5 // pred_fallthru
        _
      %p220 = scmp.lt.s32.totalorder %s18, 2
      // Predicated region
      $region29: #{tpu_custom_call.1} parent=5 // pred_check
        %p221 = pneg %p220
      $region30: #{tpu_custom_call.1} parent=5 // pred_check_branch
        %223 = sbr.rel (%p221) target = $region32
      $region31: #{tpu_custom_call.1} parent=5 // pred_region
        // Predicated region
        $region33: #{tpu_custom_call.1} parent=31 // pred_check
          %p224 = pneg %p50
        $region34: #{tpu_custom_call.1} parent=31 // pred_check_branch
          %226 = sbr.rel (%p224) target = $region36
        $region35: #{tpu_custom_call.1} parent=31 // pred_region
          %s227 = sand.u32 %s40, 1
          %s228 = scalar_lea.sflag [#allocation3], %s227
          %s229 = sand.u32 %s40, 1
          %s230 = smul.addr %s229, 256
          %s231 = scalar_lea.vmem [#allocation2], %s230
          %s232 = smul.u32 32, %s26
          %s234 = ssub.s32 4096, 4096
          %235 = vsyncadd %s228, %s234
          %s236 = smul.addr %s232, 128
          %s237 = scalar_lea.hbm %s0, %s236
          %s238 = sshll.u32 %s231, 4
          %s239 = int_to_ptr.vmem [resolvable:$true] %s238
          %244 = dma.hbm_to_vmem [thread:$0]  %s237, 4096, %s239, %s228, 128, 128, 8
        $region36: #{tpu_custom_call.1} parent=31 // pred_fallthru
          _
      $region32: #{tpu_custom_call.1} parent=5 // pred_fallthru
        _
      %p245 = scmp.le.s32.totalorder 1, %s18
      %p246 = scmp.lt.s32.totalorder %s18, 3
      %p247 = pnand %p245, %p246
      %p248 = pneg %p247
      // Predicated region
      $region37: #{tpu_custom_call.1} parent=5 // pred_check
        _
      $region38: #{tpu_custom_call.1} parent=5 // pred_check_branch
        %250 = sbr.rel (%p247) target = $region40
      $region39: #{tpu_custom_call.1} parent=5 // pred_region
        %s251 = ssub.s32 %s18, 1
        %s252 = sand.u32 %s43, 1
        %s253 = scalar_lea.sflag [#allocation3], %s252
        %s254 = sand.u32 %s43, 1
        %s255 = smul.addr %s254, 256
        %s256 = scalar_lea.vmem [#allocation2], %s255
        // Predicated region
        $region41: #{tpu_custom_call.1} parent=39 // pred_check
          %p257 = pneg %p56
        $region42: #{tpu_custom_call.1} parent=39 // pred_check_branch
          %259 = sbr.rel (%p257) target = $region44
        $region43: #{tpu_custom_call.1} parent=39 // pred_region
          %260 = dma.done %s253, 4096
        $region44: #{tpu_custom_call.1} parent=39 // pred_fallthru
          _
        // Predicated region
        $region45: #{tpu_custom_call.1} parent=39 // pred_check
          %p261 = pneg %p124
        $region46: #{tpu_custom_call.1} parent=39 // pred_check_branch
          %263 = sbr.rel (%p261) target = $region48
        $region47: #{tpu_custom_call.1} parent=39 // pred_region
          %264 = dma.done [#allocation6], 1024
        $region48: #{tpu_custom_call.1} parent=39 // pred_fallthru
          _
        %s265 = sand.u32 %s43, 1
        %s266 = scalar_lea.sflag [#allocation3], %s265
        %s267 = sand.u32 %s43, 1
        %s268 = smul.addr %s267, 256
        %s269 = scalar_lea.vmem [#allocation2], %s268
        %p270 = pneg %p56
        %p271 = pneg %p53
        %p272 = pneg %p77
        %p273 = pneg %p74
        %p274 = pneg %p98
        %p275 = pneg %p95
        %p276 = pneg %p124
        %p277 = pneg %p121
        %p278 = scmp.lt.s32.totalorder %s27, 0
        %s279 = scalar_select %p278, %s27, 0
        %s280 = scalar_lea.vmem %s4, %s279
        %p281 = pneg %p150
        %p282 = pneg %p147
        %p283 = pneg %p178
        %p284 = pneg %p175
        %s285 = sand.u32 %s165, 1
        %s286 = scalar_lea.sflag [#allocation4], %s285
        %s287 = sand.u32 %s165, 1
        %s288 = smul.addr %s287, 256
        %s289 = scalar_lea.vmem [#allocation7], %s288
        %s290 = smul.u32 32, %s28
        %p291 = scmp.lt.s32.totalorder %s27, 0
        %s292 = scalar_select %p291, %s27, 0
        %s293 = scalar_lea.vmem %s4, %s292
        %s294 = smul.u32 32, %s28
        %v296 = vld [vmem:[%s256] sm:$0xff]
        %v297 = vld [vmem:[%s256 + $0x8] sm:$0xff]
        %v298 = vld [vmem:[%s256 + $0x10] sm:$0xff]
        %v299 = vld [vmem:[%s256 + $0x18] sm:$0xff]
        %v300 = vld [vmem:[%s256 + $0x20] sm:$0xff]
        %v301 = vld [vmem:[%s256 + $0x28] sm:$0xff]
        %v302 = vld [vmem:[%s256 + $0x30] sm:$0xff]
        %v303 = vld [vmem:[%s256 + $0x38] sm:$0xff]
        %v304 = vld [vmem:[%s256 + $0x40] sm:$0xff]
        %v305 = vld [vmem:[%s256 + $0x48] sm:$0xff]
        %v306 = vld [vmem:[%s256 + $0x50] sm:$0xff]
        %v307 = vld [vmem:[%s256 + $0x58] sm:$0xff]
        %v308 = vld [vmem:[%s256 + $0x60] sm:$0xff]
        %v309 = vld [vmem:[%s256 + $0x68] sm:$0xff]
        %v310 = vld [vmem:[%s256 + $0x70] sm:$0xff]
        %v311 = vld [vmem:[%s256 + $0x78] sm:$0xff]
        %v312 = vld [vmem:[%s256 + $0x80] sm:$0xff]
        %v313 = vld [vmem:[%s256 + $0x88] sm:$0xff]
        %v314 = vld [vmem:[%s256 + $0x90] sm:$0xff]
        %v315 = vld [vmem:[%s256 + $0x98] sm:$0xff]
        %v316 = vld [vmem:[%s256 + $0xa0] sm:$0xff]
        %v317 = vld [vmem:[%s256 + $0xa8] sm:$0xff]
        %v318 = vld [vmem:[%s256 + $0xb0] sm:$0xff]
        %v319 = vld [vmem:[%s256 + $0xb8] sm:$0xff]
        %v320 = vld [vmem:[%s256 + $0xc0] sm:$0xff]
        %v321 = vld [vmem:[%s256 + $0xc8] sm:$0xff]
        %v322 = vld [vmem:[%s256 + $0xd0] sm:$0xff]
        %v323 = vld [vmem:[%s256 + $0xd8] sm:$0xff]
        %v324 = vld [vmem:[%s256 + $0xe0] sm:$0xff]
        %v325 = vld [vmem:[%s256 + $0xe8] sm:$0xff]
        %v326 = vld [vmem:[%s256 + $0xf0] sm:$0xff]
        %v327 = vld [vmem:[%s256 + $0xf8] sm:$0xff]
        %328 = vadd.xlane.f32.xlu0 %v296
        %v329 = vpop.xlane.xlu0 %328
        %330 = vadd.xlane.f32.xlu0 %v297
        %v331 = vpop.xlane.xlu0 %330
        %332 = vadd.xlane.f32.xlu0 %v298
        %v333 = vpop.xlane.xlu0 %332
        %334 = vadd.xlane.f32.xlu0 %v299
        %v335 = vpop.xlane.xlu0 %334
        %336 = vadd.xlane.f32.xlu0 %v300
        %v337 = vpop.xlane.xlu0 %336
        %338 = vadd.xlane.f32.xlu0 %v301
        %v339 = vpop.xlane.xlu0 %338
        %340 = vadd.xlane.f32.xlu0 %v302
        %v341 = vpop.xlane.xlu0 %340
        %342 = vadd.xlane.f32.xlu0 %v303
        %v343 = vpop.xlane.xlu0 %342
        %344 = vadd.xlane.f32.xlu0 %v304
        %v345 = vpop.xlane.xlu0 %344
        %346 = vadd.xlane.f32.xlu0 %v305
        %v347 = vpop.xlane.xlu0 %346
        %348 = vadd.xlane.f32.xlu0 %v306
        %v349 = vpop.xlane.xlu0 %348
        %350 = vadd.xlane.f32.xlu0 %v307
        %v351 = vpop.xlane.xlu0 %350
        %352 = vadd.xlane.f32.xlu0 %v308
        %v353 = vpop.xlane.xlu0 %352
        %354 = vadd.xlane.f32.xlu0 %v309
        %v355 = vpop.xlane.xlu0 %354
        %356 = vadd.xlane.f32.xlu0 %v310
        %v357 = vpop.xlane.xlu0 %356
        %358 = vadd.xlane.f32.xlu0 %v311
        %v359 = vpop.xlane.xlu0 %358
        %360 = vadd.xlane.f32.xlu0 %v312
        %v361 = vpop.xlane.xlu0 %360
        %362 = vadd.xlane.f32.xlu0 %v313
        %v363 = vpop.xlane.xlu0 %362
        %364 = vadd.xlane.f32.xlu0 %v314
        %v365 = vpop.xlane.xlu0 %364
        %366 = vadd.xlane.f32.xlu0 %v315
        %v367 = vpop.xlane.xlu0 %366
        %368 = vadd.xlane.f32.xlu0 %v316
        %v369 = vpop.xlane.xlu0 %368
        %370 = vadd.xlane.f32.xlu0 %v317
        %v371 = vpop.xlane.xlu0 %370
        %372 = vadd.xlane.f32.xlu0 %v318
        %v373 = vpop.xlane.xlu0 %372
        %374 = vadd.xlane.f32.xlu0 %v319
        %v375 = vpop.xlane.xlu0 %374
        %376 = vadd.xlane.f32.xlu0 %v320
        %v377 = vpop.xlane.xlu0 %376
        %378 = vadd.xlane.f32.xlu0 %v321
        %v379 = vpop.xlane.xlu0 %378
        %380 = vadd.xlane.f32.xlu0 %v322
        %v381 = vpop.xlane.xlu0 %380
        %382 = vadd.xlane.f32.xlu0 %v323
        %v383 = vpop.xlane.xlu0 %382
        %384 = vadd.xlane.f32.xlu0 %v324
        %v385 = vpop.xlane.xlu0 %384
        %386 = vadd.xlane.f32.xlu0 %v325
        %v387 = vpop.xlane.xlu0 %386
        %388 = vadd.xlane.f32.xlu0 %v326
        %v389 = vpop.xlane.xlu0 %388
        %390 = vadd.xlane.f32.xlu0 %v327
        %v391 = vpop.xlane.xlu0 %390
        %v392 = vrcp.pop 128.0
        %v393 = vmul.f32 %v329, %v392
        %v394 = vmul.f32 %v331, %v392
        %v395 = vmul.f32 %v333, %v392
        %v396 = vmul.f32 %v335, %v392
        %v397 = vmul.f32 %v337, %v392
        %v398 = vmul.f32 %v339, %v392
        %v399 = vmul.f32 %v341, %v392
        %v400 = vmul.f32 %v343, %v392
        %v401 = vmul.f32 %v345, %v392
        %v402 = vmul.f32 %v347, %v392
        %v403 = vmul.f32 %v349, %v392
        %v404 = vmul.f32 %v351, %v392
        %v405 = vmul.f32 %v353, %v392
        %v406 = vmul.f32 %v355, %v392
        %v407 = vmul.f32 %v357, %v392
        %v408 = vmul.f32 %v359, %v392
        %v409 = vmul.f32 %v361, %v392
        %v410 = vmul.f32 %v363, %v392
        %v411 = vmul.f32 %v365, %v392
        %v412 = vmul.f32 %v367, %v392
        %v413 = vmul.f32 %v369, %v392
        %v414 = vmul.f32 %v371, %v392
        %v415 = vmul.f32 %v373, %v392
        %v416 = vmul.f32 %v375, %v392
        %v417 = vmul.f32 %v377, %v392
        %v418 = vmul.f32 %v379, %v392
        %v419 = vmul.f32 %v381, %v392
        %v420 = vmul.f32 %v383, %v392
        %v421 = vmul.f32 %v385, %v392
        %v422 = vmul.f32 %v387, %v392
        %v423 = vmul.f32 %v389, %v392
        %v424 = vmul.f32 %v391, %v392
        %v425 = vsub.f32 %v296, %v393
        %v426 = vsub.f32 %v297, %v394
        %v427 = vsub.f32 %v298, %v395
        %v428 = vsub.f32 %v299, %v396
        %v429 = vsub.f32 %v300, %v397
        %v430 = vsub.f32 %v301, %v398
        %v431 = vsub.f32 %v302, %v399
        %v432 = vsub.f32 %v303, %v400
        %v433 = vsub.f32 %v304, %v401
        %v434 = vsub.f32 %v305, %v402
        %v435 = vsub.f32 %v306, %v403
        %v436 = vsub.f32 %v307, %v404
        %v437 = vsub.f32 %v308, %v405
        %v438 = vsub.f32 %v309, %v406
        %v439 = vsub.f32 %v310, %v407
        %v440 = vsub.f32 %v311, %v408
        %v441 = vsub.f32 %v312, %v409
        %v442 = vsub.f32 %v313, %v410
        %v443 = vsub.f32 %v314, %v411
        %v444 = vsub.f32 %v315, %v412
        %v445 = vsub.f32 %v316, %v413
        %v446 = vsub.f32 %v317, %v414
        %v447 = vsub.f32 %v318, %v415
        %v448 = vsub.f32 %v319, %v416
        %v449 = vsub.f32 %v320, %v417
        %v450 = vsub.f32 %v321, %v418
        %v451 = vsub.f32 %v322, %v419
        %v452 = vsub.f32 %v323, %v420
        %v453 = vsub.f32 %v324, %v421
        %v454 = vsub.f32 %v325, %v422
        %v455 = vsub.f32 %v326, %v423
        %v456 = vsub.f32 %v327, %v424
        %v457 = vmul.f32 %v425, %v425
        %v458 = vmul.f32 %v426, %v426
        %v459 = vmul.f32 %v427, %v427
        %v460 = vmul.f32 %v428, %v428
        %v461 = vmul.f32 %v429, %v429
        %v462 = vmul.f32 %v430, %v430
        %v463 = vmul.f32 %v431, %v431
        %v464 = vmul.f32 %v432, %v432
        %v465 = vmul.f32 %v433, %v433
        %v466 = vmul.f32 %v434, %v434
        %v467 = vmul.f32 %v435, %v435
        %v468 = vmul.f32 %v436, %v436
        %v469 = vmul.f32 %v437, %v437
        %v470 = vmul.f32 %v438, %v438
        %v471 = vmul.f32 %v439, %v439
        %v472 = vmul.f32 %v440, %v440
        %v473 = vmul.f32 %v441, %v441
        %v474 = vmul.f32 %v442, %v442
        %v475 = vmul.f32 %v443, %v443
        %v476 = vmul.f32 %v444, %v444
        %v477 = vmul.f32 %v445, %v445
        %v478 = vmul.f32 %v446, %v446
        %v479 = vmul.f32 %v447, %v447
        %v480 = vmul.f32 %v448, %v448
        %v481 = vmul.f32 %v449, %v449
        %v482 = vmul.f32 %v450, %v450
        %v483 = vmul.f32 %v451, %v451
        %v484 = vmul.f32 %v452, %v452
        %v485 = vmul.f32 %v453, %v453
        %v486 = vmul.f32 %v454, %v454
        %v487 = vmul.f32 %v455, %v455
        %v488 = vmul.f32 %v456, %v456
        %489 = vadd.xlane.f32.xlu0 %v457
        %v490 = vpop.xlane.xlu0 %489
        %491 = vadd.xlane.f32.xlu0 %v458
        %v492 = vpop.xlane.xlu0 %491
        %493 = vadd.xlane.f32.xlu0 %v459
        %v494 = vpop.xlane.xlu0 %493
        %495 = vadd.xlane.f32.xlu0 %v460
        %v496 = vpop.xlane.xlu0 %495
        %497 = vadd.xlane.f32.xlu0 %v461
        %v498 = vpop.xlane.xlu0 %497
        %499 = vadd.xlane.f32.xlu0 %v462
        %v500 = vpop.xlane.xlu0 %499
        %501 = vadd.xlane.f32.xlu0 %v463
        %v502 = vpop.xlane.xlu0 %501
        %503 = vadd.xlane.f32.xlu0 %v464
        %v504 = vpop.xlane.xlu0 %503
        %505 = vadd.xlane.f32.xlu0 %v465
        %v506 = vpop.xlane.xlu0 %505
        %507 = vadd.xlane.f32.xlu0 %v466
        %v508 = vpop.xlane.xlu0 %507
        %509 = vadd.xlane.f32.xlu0 %v467
        %v510 = vpop.xlane.xlu0 %509
        %511 = vadd.xlane.f32.xlu0 %v468
        %v512 = vpop.xlane.xlu0 %511
        %513 = vadd.xlane.f32.xlu0 %v469
        %v514 = vpop.xlane.xlu0 %513
        %515 = vadd.xlane.f32.xlu0 %v470
        %v516 = vpop.xlane.xlu0 %515
        %517 = vadd.xlane.f32.xlu0 %v471
        %v518 = vpop.xlane.xlu0 %517
        %519 = vadd.xlane.f32.xlu0 %v472
        %v520 = vpop.xlane.xlu0 %519
        %521 = vadd.xlane.f32.xlu0 %v473
        %v522 = vpop.xlane.xlu0 %521
        %523 = vadd.xlane.f32.xlu0 %v474
        %v524 = vpop.xlane.xlu0 %523
        %525 = vadd.xlane.f32.xlu0 %v475
        %v526 = vpop.xlane.xlu0 %525
        %527 = vadd.xlane.f32.xlu0 %v476
        %v528 = vpop.xlane.xlu0 %527
        %529 = vadd.xlane.f32.xlu0 %v477
        %v530 = vpop.xlane.xlu0 %529
        %531 = vadd.xlane.f32.xlu0 %v478
        %v532 = vpop.xlane.xlu0 %531
        %533 = vadd.xlane.f32.xlu0 %v479
        %v534 = vpop.xlane.xlu0 %533
        %535 = vadd.xlane.f32.xlu0 %v480
        %v536 = vpop.xlane.xlu0 %535
        %537 = vadd.xlane.f32.xlu0 %v481
        %v538 = vpop.xlane.xlu0 %537
        %539 = vadd.xlane.f32.xlu0 %v482
        %v540 = vpop.xlane.xlu0 %539
        %541 = vadd.xlane.f32.xlu0 %v483
        %v542 = vpop.xlane.xlu0 %541
        %543 = vadd.xlane.f32.xlu0 %v484
        %v544 = vpop.xlane.xlu0 %543
        %545 = vadd.xlane.f32.xlu0 %v485
        %v546 = vpop.xlane.xlu0 %545
        %547 = vadd.xlane.f32.xlu0 %v486
        %v548 = vpop.xlane.xlu0 %547
        %549 = vadd.xlane.f32.xlu0 %v487
        %v550 = vpop.xlane.xlu0 %549
        %551 = vadd.xlane.f32.xlu0 %v488
        %v552 = vpop.xlane.xlu0 %551
        %v553 = vrcp.pop 127.0
        %v554 = vmul.f32 %v490, %v553
        %v555 = vmul.f32 %v492, %v553
        %v556 = vmul.f32 %v494, %v553
        %v557 = vmul.f32 %v496, %v553
        %v558 = vmul.f32 %v498, %v553
        %v559 = vmul.f32 %v500, %v553
        %v560 = vmul.f32 %v502, %v553
        %v561 = vmul.f32 %v504, %v553
        %v562 = vmul.f32 %v506, %v553
        %v563 = vmul.f32 %v508, %v553
        %v564 = vmul.f32 %v510, %v553
        %v565 = vmul.f32 %v512, %v553
        %v566 = vmul.f32 %v514, %v553
        %v567 = vmul.f32 %v516, %v553
        %v568 = vmul.f32 %v518, %v553
        %v569 = vmul.f32 %v520, %v553
        %v570 = vmul.f32 %v522, %v553
        %v571 = vmul.f32 %v524, %v553
        %v572 = vmul.f32 %v526, %v553
        %v573 = vmul.f32 %v528, %v553
        %v574 = vmul.f32 %v530, %v553
        %v575 = vmul.f32 %v532, %v553
        %v576 = vmul.f32 %v534, %v553
        %v577 = vmul.f32 %v536, %v553
        %v578 = vmul.f32 %v538, %v553
        %v579 = vmul.f32 %v540, %v553
        %v580 = vmul.f32 %v542, %v553
        %v581 = vmul.f32 %v544, %v553
        %v582 = vmul.f32 %v546, %v553
        %v583 = vmul.f32 %v548, %v553
        %v584 = vmul.f32 %v550, %v553
        %v585 = vmul.f32 %v552, %v553
        %v586 = vrsqrt.pop %v554
        %v587 = vmul.f32 %v554, %v586
        %vm588 = vcmp.eq.f32.partialorder %v554, inf
        %v589 = vsel %vm588, %v554, %v587
        %vm590 = vcmp.eq.f32.partialorder %v554, 0.0
        %v591 = vand.u32 %v554, 2147483648
        %v592 = vsel %vm590, %v591, %v589
        %v593 = vrsqrt.pop %v555
        %v594 = vmul.f32 %v555, %v593
        %vm595 = vcmp.eq.f32.partialorder %v555, inf
        %v596 = vsel %vm595, %v555, %v594
        %vm597 = vcmp.eq.f32.partialorder %v555, 0.0
        %v598 = vand.u32 %v555, 2147483648
        %v599 = vsel %vm597, %v598, %v596
        %v600 = vrsqrt.pop %v556
        %v601 = vmul.f32 %v556, %v600
        %vm602 = vcmp.eq.f32.partialorder %v556, inf
        %v603 = vsel %vm602, %v556, %v601
        %vm604 = vcmp.eq.f32.partialorder %v556, 0.0
        %v605 = vand.u32 %v556, 2147483648
        %v606 = vsel %vm604, %v605, %v603
        %v607 = vrsqrt.pop %v557
        %v608 = vmul.f32 %v557, %v607
        %vm609 = vcmp.eq.f32.partialorder %v557, inf
        %v610 = vsel %vm609, %v557, %v608
        %vm611 = vcmp.eq.f32.partialorder %v557, 0.0
        %v612 = vand.u32 %v557, 2147483648
        %v613 = vsel %vm611, %v612, %v610
        %v614 = vrsqrt.pop %v558
        %v615 = vmul.f32 %v558, %v614
        %vm616 = vcmp.eq.f32.partialorder %v558, inf
        %v617 = vsel %vm616, %v558, %v615
        %vm618 = vcmp.eq.f32.partialorder %v558, 0.0
        %v619 = vand.u32 %v558, 2147483648
        %v620 = vsel %vm618, %v619, %v617
        %v621 = vrsqrt.pop %v559
        %v622 = vmul.f32 %v559, %v621
        %vm623 = vcmp.eq.f32.partialorder %v559, inf
        %v624 = vsel %vm623, %v559, %v622
        %vm625 = vcmp.eq.f32.partialorder %v559, 0.0
        %v626 = vand.u32 %v559, 2147483648
        %v627 = vsel %vm625, %v626, %v624
        %v628 = vrsqrt.pop %v560
        %v629 = vmul.f32 %v560, %v628
        %vm630 = vcmp.eq.f32.partialorder %v560, inf
        %v631 = vsel %vm630, %v560, %v629
        %vm632 = vcmp.eq.f32.partialorder %v560, 0.0
        %v633 = vand.u32 %v560, 2147483648
        %v634 = vsel %vm632, %v633, %v631
        %v635 = vrsqrt.pop %v561
        %v636 = vmul.f32 %v561, %v635
        %vm637 = vcmp.eq.f32.partialorder %v561, inf
        %v638 = vsel %vm637, %v561, %v636
        %vm639 = vcmp.eq.f32.partialorder %v561, 0.0
        %v640 = vand.u32 %v561, 2147483648
        %v641 = vsel %vm639, %v640, %v638
        %v642 = vrsqrt.pop %v562
        %v643 = vmul.f32 %v562, %v642
        %vm644 = vcmp.eq.f32.partialorder %v562, inf
        %v645 = vsel %vm644, %v562, %v643
        %vm646 = vcmp.eq.f32.partialorder %v562, 0.0
        %v647 = vand.u32 %v562, 2147483648
        %v648 = vsel %vm646, %v647, %v645
        %v649 = vrsqrt.pop %v563
        %v650 = vmul.f32 %v563, %v649
        %vm651 = vcmp.eq.f32.partialorder %v563, inf
        %v652 = vsel %vm651, %v563, %v650
        %vm653 = vcmp.eq.f32.partialorder %v563, 0.0
        %v654 = vand.u32 %v563, 2147483648
        %v655 = vsel %vm653, %v654, %v652
        %v656 = vrsqrt.pop %v564
        %v657 = vmul.f32 %v564, %v656
        %vm658 = vcmp.eq.f32.partialorder %v564, inf
        %v659 = vsel %vm658, %v564, %v657
        %vm660 = vcmp.eq.f32.partialorder %v564, 0.0
        %v661 = vand.u32 %v564, 2147483648
        %v662 = vsel %vm660, %v661, %v659
        %v663 = vrsqrt.pop %v565
        %v664 = vmul.f32 %v565, %v663
        %vm665 = vcmp.eq.f32.partialorder %v565, inf
        %v666 = vsel %vm665, %v565, %v664
        %vm667 = vcmp.eq.f32.partialorder %v565, 0.0
        %v668 = vand.u32 %v565, 2147483648
        %v669 = vsel %vm667, %v668, %v666
        %v670 = vrsqrt.pop %v566
        %v671 = vmul.f32 %v566, %v670
        %vm672 = vcmp.eq.f32.partialorder %v566, inf
        %v673 = vsel %vm672, %v566, %v671
        %vm674 = vcmp.eq.f32.partialorder %v566, 0.0
        %v675 = vand.u32 %v566, 2147483648
        %v676 = vsel %vm674, %v675, %v673
        %v677 = vrsqrt.pop %v567
        %v678 = vmul.f32 %v567, %v677
        %vm679 = vcmp.eq.f32.partialorder %v567, inf
        %v680 = vsel %vm679, %v567, %v678
        %vm681 = vcmp.eq.f32.partialorder %v567, 0.0
        %v682 = vand.u32 %v567, 2147483648
        %v683 = vsel %vm681, %v682, %v680
        %v684 = vrsqrt.pop %v568
        %v685 = vmul.f32 %v568, %v684
        %vm686 = vcmp.eq.f32.partialorder %v568, inf
        %v687 = vsel %vm686, %v568, %v685
        %vm688 = vcmp.eq.f32.partialorder %v568, 0.0
        %v689 = vand.u32 %v568, 2147483648
        %v690 = vsel %vm688, %v689, %v687
        %v691 = vrsqrt.pop %v569
        %v692 = vmul.f32 %v569, %v691
        %vm693 = vcmp.eq.f32.partialorder %v569, inf
        %v694 = vsel %vm693, %v569, %v692
        %vm695 = vcmp.eq.f32.partialorder %v569, 0.0
        %v696 = vand.u32 %v569, 2147483648
        %v697 = vsel %vm695, %v696, %v694
        %v698 = vrsqrt.pop %v570
        %v699 = vmul.f32 %v570, %v698
        %vm700 = vcmp.eq.f32.partialorder %v570, inf
        %v701 = vsel %vm700, %v570, %v699
        %vm702 = vcmp.eq.f32.partialorder %v570, 0.0
        %v703 = vand.u32 %v570, 2147483648
        %v704 = vsel %vm702, %v703, %v701
        %v705 = vrsqrt.pop %v571
        %v706 = vmul.f32 %v571, %v705
        %vm707 = vcmp.eq.f32.partialorder %v571, inf
        %v708 = vsel %vm707, %v571, %v706
        %vm709 = vcmp.eq.f32.partialorder %v571, 0.0
        %v710 = vand.u32 %v571, 2147483648
        %v711 = vsel %vm709, %v710, %v708
        %v712 = vrsqrt.pop %v572
        %v713 = vmul.f32 %v572, %v712
        %vm714 = vcmp.eq.f32.partialorder %v572, inf
        %v715 = vsel %vm714, %v572, %v713
        %vm716 = vcmp.eq.f32.partialorder %v572, 0.0
        %v717 = vand.u32 %v572, 2147483648
        %v718 = vsel %vm716, %v717, %v715
        %v719 = vrsqrt.pop %v573
        %v720 = vmul.f32 %v573, %v719
        %vm721 = vcmp.eq.f32.partialorder %v573, inf
        %v722 = vsel %vm721, %v573, %v720
        %vm723 = vcmp.eq.f32.partialorder %v573, 0.0
        %v724 = vand.u32 %v573, 2147483648
        %v725 = vsel %vm723, %v724, %v722
        %v726 = vrsqrt.pop %v574
        %v727 = vmul.f32 %v574, %v726
        %vm728 = vcmp.eq.f32.partialorder %v574, inf
        %v729 = vsel %vm728, %v574, %v727
        %vm730 = vcmp.eq.f32.partialorder %v574, 0.0
        %v731 = vand.u32 %v574, 2147483648
        %v732 = vsel %vm730, %v731, %v729
        %v733 = vrsqrt.pop %v575
        %v734 = vmul.f32 %v575, %v733
        %vm735 = vcmp.eq.f32.partialorder %v575, inf
        %v736 = vsel %vm735, %v575, %v734
        %vm737 = vcmp.eq.f32.partialorder %v575, 0.0
        %v738 = vand.u32 %v575, 2147483648
        %v739 = vsel %vm737, %v738, %v736
        %v740 = vrsqrt.pop %v576
        %v741 = vmul.f32 %v576, %v740
        %vm742 = vcmp.eq.f32.partialorder %v576, inf
        %v743 = vsel %vm742, %v576, %v741
        %vm744 = vcmp.eq.f32.partialorder %v576, 0.0
        %v745 = vand.u32 %v576, 2147483648
        %v746 = vsel %vm744, %v745, %v743
        %v747 = vrsqrt.pop %v577
        %v748 = vmul.f32 %v577, %v747
        %vm749 = vcmp.eq.f32.partialorder %v577, inf
        %v750 = vsel %vm749, %v577, %v748
        %vm751 = vcmp.eq.f32.partialorder %v577, 0.0
        %v752 = vand.u32 %v577, 2147483648
        %v753 = vsel %vm751, %v752, %v750
        %v754 = vrsqrt.pop %v578
        %v755 = vmul.f32 %v578, %v754
        %vm756 = vcmp.eq.f32.partialorder %v578, inf
        %v757 = vsel %vm756, %v578, %v755
        %vm758 = vcmp.eq.f32.partialorder %v578, 0.0
        %v759 = vand.u32 %v578, 2147483648
        %v760 = vsel %vm758, %v759, %v757
        %v761 = vrsqrt.pop %v579
        %v762 = vmul.f32 %v579, %v761
        %vm763 = vcmp.eq.f32.partialorder %v579, inf
        %v764 = vsel %vm763, %v579, %v762
        %vm765 = vcmp.eq.f32.partialorder %v579, 0.0
        %v766 = vand.u32 %v579, 2147483648
        %v767 = vsel %vm765, %v766, %v764
        %v768 = vrsqrt.pop %v580
        %v769 = vmul.f32 %v580, %v768
        %vm770 = vcmp.eq.f32.partialorder %v580, inf
        %v771 = vsel %vm770, %v580, %v769
        %vm772 = vcmp.eq.f32.partialorder %v580, 0.0
        %v773 = vand.u32 %v580, 2147483648
        %v774 = vsel %vm772, %v773, %v771
        %v775 = vrsqrt.pop %v581
        %v776 = vmul.f32 %v581, %v775
        %vm777 = vcmp.eq.f32.partialorder %v581, inf
        %v778 = vsel %vm777, %v581, %v776
        %vm779 = vcmp.eq.f32.partialorder %v581, 0.0
        %v780 = vand.u32 %v581, 2147483648
        %v781 = vsel %vm779, %v780, %v778
        %v782 = vrsqrt.pop %v582
        %v783 = vmul.f32 %v582, %v782
        %vm784 = vcmp.eq.f32.partialorder %v582, inf
        %v785 = vsel %vm784, %v582, %v783
        %vm786 = vcmp.eq.f32.partialorder %v582, 0.0
        %v787 = vand.u32 %v582, 2147483648
        %v788 = vsel %vm786, %v787, %v785
        %v789 = vrsqrt.pop %v583
        %v790 = vmul.f32 %v583, %v789
        %vm791 = vcmp.eq.f32.partialorder %v583, inf
        %v792 = vsel %vm791, %v583, %v790
        %vm793 = vcmp.eq.f32.partialorder %v583, 0.0
        %v794 = vand.u32 %v583, 2147483648
        %v795 = vsel %vm793, %v794, %v792
        %v796 = vrsqrt.pop %v584
        %v797 = vmul.f32 %v584, %v796
        %vm798 = vcmp.eq.f32.partialorder %v584, inf
        %v799 = vsel %vm798, %v584, %v797
        %vm800 = vcmp.eq.f32.partialorder %v584, 0.0
        %v801 = vand.u32 %v584, 2147483648
        %v802 = vsel %vm800, %v801, %v799
        %v803 = vrsqrt.pop %v585
        %v804 = vmul.f32 %v585, %v803
        %vm805 = vcmp.eq.f32.partialorder %v585, inf
        %v806 = vsel %vm805, %v585, %v804
        %vm807 = vcmp.eq.f32.partialorder %v585, 0.0
        %v808 = vand.u32 %v585, 2147483648
        %v809 = vsel %vm807, %v808, %v806
        %v810 = vadd.f32 %v592, 1e-06
        %v811 = vadd.f32 %v599, 1e-06
        %v812 = vadd.f32 %v606, 1e-06
        %v813 = vadd.f32 %v613, 1e-06
        %v814 = vadd.f32 %v620, 1e-06
        %v815 = vadd.f32 %v627, 1e-06
        %v816 = vadd.f32 %v634, 1e-06
        %v817 = vadd.f32 %v641, 1e-06
        %v818 = vadd.f32 %v648, 1e-06
        %v819 = vadd.f32 %v655, 1e-06
        %v820 = vadd.f32 %v662, 1e-06
        %v821 = vadd.f32 %v669, 1e-06
        %v822 = vadd.f32 %v676, 1e-06
        %v823 = vadd.f32 %v683, 1e-06
        %v824 = vadd.f32 %v690, 1e-06
        %v825 = vadd.f32 %v697, 1e-06
        %v826 = vadd.f32 %v704, 1e-06
        %v827 = vadd.f32 %v711, 1e-06
        %v828 = vadd.f32 %v718, 1e-06
        %v829 = vadd.f32 %v725, 1e-06
        %v830 = vadd.f32 %v732, 1e-06
        %v831 = vadd.f32 %v739, 1e-06
        %v832 = vadd.f32 %v746, 1e-06
        %v833 = vadd.f32 %v753, 1e-06
        %v834 = vadd.f32 %v760, 1e-06
        %v835 = vadd.f32 %v767, 1e-06
        %v836 = vadd.f32 %v774, 1e-06
        %v837 = vadd.f32 %v781, 1e-06
        %v838 = vadd.f32 %v788, 1e-06
        %v839 = vadd.f32 %v795, 1e-06
        %v840 = vadd.f32 %v802, 1e-06
        %v841 = vadd.f32 %v809, 1e-06
        %v842 = vrcp.pop %v810
        %v843 = vrcp.pop %v811
        %v844 = vrcp.pop %v812
        %v845 = vrcp.pop %v813
        %v846 = vrcp.pop %v814
        %v847 = vrcp.pop %v815
        %v848 = vrcp.pop %v816
        %v849 = vrcp.pop %v817
        %v850 = vrcp.pop %v818
        %v851 = vrcp.pop %v819
        %v852 = vrcp.pop %v820
        %v853 = vrcp.pop %v821
        %v854 = vrcp.pop %v822
        %v855 = vrcp.pop %v823
        %v856 = vrcp.pop %v824
        %v857 = vrcp.pop %v825
        %v858 = vrcp.pop %v826
        %v859 = vrcp.pop %v827
        %v860 = vrcp.pop %v828
        %v861 = vrcp.pop %v829
        %v862 = vrcp.pop %v830
        %v863 = vrcp.pop %v831
        %v864 = vrcp.pop %v832
        %v865 = vrcp.pop %v833
        %v866 = vrcp.pop %v834
        %v867 = vrcp.pop %v835
        %v868 = vrcp.pop %v836
        %v869 = vrcp.pop %v837
        %v870 = vrcp.pop %v838
        %v871 = vrcp.pop %v839
        %v872 = vrcp.pop %v840
        %v873 = vrcp.pop %v841
        %v874 = vld [vmem:[%s1] sm:$0x1]
        %v875 = vld [vmem:[%s2] sm:$0x1]
        %v876 = vmul.f32 %v425, %v842
        %v877 = vmul.f32 %v426, %v843
        %v878 = vmul.f32 %v427, %v844
        %v879 = vmul.f32 %v428, %v845
        %v880 = vmul.f32 %v429, %v846
        %v881 = vmul.f32 %v430, %v847
        %v882 = vmul.f32 %v431, %v848
        %v883 = vmul.f32 %v432, %v849
        %v884 = vmul.f32 %v433, %v850
        %v885 = vmul.f32 %v434, %v851
        %v886 = vmul.f32 %v435, %v852
        %v887 = vmul.f32 %v436, %v853
        %v888 = vmul.f32 %v437, %v854
        %v889 = vmul.f32 %v438, %v855
        %v890 = vmul.f32 %v439, %v856
        %v891 = vmul.f32 %v440, %v857
        %v892 = vmul.f32 %v441, %v858
        %v893 = vmul.f32 %v442, %v859
        %v894 = vmul.f32 %v443, %v860
        %v895 = vmul.f32 %v444, %v861
        %v896 = vmul.f32 %v445, %v862
        %v897 = vmul.f32 %v446, %v863
        %v898 = vmul.f32 %v447, %v864
        %v899 = vmul.f32 %v448, %v865
        %v900 = vmul.f32 %v449, %v866
        %v901 = vmul.f32 %v450, %v867
        %v902 = vmul.f32 %v451, %v868
        %v903 = vmul.f32 %v452, %v869
        %v904 = vmul.f32 %v453, %v870
        %v905 = vmul.f32 %v454, %v871
        %v906 = vmul.f32 %v455, %v872
        %v907 = vmul.f32 %v456, %v873
        %v909 = vlaneseq
        %v910 = vshrl.u32 %v909, 7
        %v911 = vsub.s32 0, %v910
        %v912 = vrot.slane %v874, %v911
        %v914 = vmul.f32 %v912, %v876
        %v915 = vmul.f32 %v912, %v877
        %v916 = vmul.f32 %v912, %v878
        %v917 = vmul.f32 %v912, %v879
        %v918 = vmul.f32 %v912, %v880
        %v919 = vmul.f32 %v912, %v881
        %v920 = vmul.f32 %v912, %v882
        %v921 = vmul.f32 %v912, %v883
        %v922 = vmul.f32 %v912, %v884
        %v923 = vmul.f32 %v912, %v885
        %v924 = vmul.f32 %v912, %v886
        %v925 = vmul.f32 %v912, %v887
        %v926 = vmul.f32 %v912, %v888
        %v927 = vmul.f32 %v912, %v889
        %v928 = vmul.f32 %v912, %v890
        %v929 = vmul.f32 %v912, %v891
        %v930 = vmul.f32 %v912, %v892
        %v931 = vmul.f32 %v912, %v893
        %v932 = vmul.f32 %v912, %v894
        %v933 = vmul.f32 %v912, %v895
        %v934 = vmul.f32 %v912, %v896
        %v935 = vmul.f32 %v912, %v897
        %v936 = vmul.f32 %v912, %v898
        %v937 = vmul.f32 %v912, %v899
        %v938 = vmul.f32 %v912, %v900
        %v939 = vmul.f32 %v912, %v901
        %v940 = vmul.f32 %v912, %v902
        %v941 = vmul.f32 %v912, %v903
        %v942 = vmul.f32 %v912, %v904
        %v943 = vmul.f32 %v912, %v905
        %v944 = vmul.f32 %v912, %v906
        %v945 = vmul.f32 %v912, %v907
        %v947 = vlaneseq
        %v948 = vshrl.u32 %v947, 7
        %v949 = vsub.s32 0, %v948
        %v950 = vrot.slane %v875, %v949
        %v952 = vadd.f32 %v914, %v950
        %v953 = vadd.f32 %v915, %v950
        %v954 = vadd.f32 %v916, %v950
        %v955 = vadd.f32 %v917, %v950
        %v956 = vadd.f32 %v918, %v950
        %v957 = vadd.f32 %v919, %v950
        %v958 = vadd.f32 %v920, %v950
        %v959 = vadd.f32 %v921, %v950
        %v960 = vadd.f32 %v922, %v950
        %v961 = vadd.f32 %v923, %v950
        %v962 = vadd.f32 %v924, %v950
        %v963 = vadd.f32 %v925, %v950
        %v964 = vadd.f32 %v926, %v950
        %v965 = vadd.f32 %v927, %v950
        %v966 = vadd.f32 %v928, %v950
        %v967 = vadd.f32 %v929, %v950
        %v968 = vadd.f32 %v930, %v950
        %v969 = vadd.f32 %v931, %v950
        %v970 = vadd.f32 %v932, %v950
        %v971 = vadd.f32 %v933, %v950
        %v972 = vadd.f32 %v934, %v950
        %v973 = vadd.f32 %v935, %v950
        %v974 = vadd.f32 %v936, %v950
        %v975 = vadd.f32 %v937, %v950
        %v976 = vadd.f32 %v938, %v950
        %v977 = vadd.f32 %v939, %v950
        %v978 = vadd.f32 %v940, %v950
        %v979 = vadd.f32 %v941, %v950
        %v980 = vadd.f32 %v942, %v950
        %v981 = vadd.f32 %v943, %v950
        %v982 = vadd.f32 %v944, %v950
        %v983 = vadd.f32 %v945, %v950
        %v984 = vpack.c.bf16 %v953, %v952
        %v985 = vpack.c.bf16 %v955, %v954
        %v986 = vpack.c.bf16 %v957, %v956
        %v987 = vpack.c.bf16 %v959, %v958
        %v988 = vpack.c.bf16 %v961, %v960
        %v989 = vpack.c.bf16 %v963, %v962
        %v990 = vpack.c.bf16 %v965, %v964
        %v991 = vpack.c.bf16 %v967, %v966
        %v992 = vpack.c.bf16 %v969, %v968
        %v993 = vpack.c.bf16 %v971, %v970
        %v994 = vpack.c.bf16 %v973, %v972
        %v995 = vpack.c.bf16 %v975, %v974
        %v996 = vpack.c.bf16 %v977, %v976
        %v997 = vpack.c.bf16 %v979, %v978
        %v998 = vpack.c.bf16 %v981, %v980
        %v999 = vpack.c.bf16 %v983, %v982
        %v1000 = vld [vmem:[#allocation5] sm:$0xf]
        %v1001 = vld [vmem:[#allocation5 + $0x4] sm:$0xf]
        %v1002 = vld [vmem:[#allocation5 + $0x8] sm:$0xf]
        %v1003 = vld [vmem:[#allocation5 + $0xc] sm:$0xf]
        %v1004 = vld [vmem:[#allocation5 + $0x10] sm:$0xf]
        %v1005 = vld [vmem:[#allocation5 + $0x14] sm:$0xf]
        %v1006 = vld [vmem:[#allocation5 + $0x18] sm:$0xf]
        %v1007 = vld [vmem:[#allocation5 + $0x1c] sm:$0xf]
        %v1008 = vld [vmem:[#allocation5 + $0x20] sm:$0xf]
        %v1009 = vld [vmem:[#allocation5 + $0x24] sm:$0xf]
        %v1010 = vld [vmem:[#allocation5 + $0x28] sm:$0xf]
        %v1011 = vld [vmem:[#allocation5 + $0x2c] sm:$0xf]
        %v1012 = vld [vmem:[#allocation5 + $0x30] sm:$0xf]
        %v1013 = vld [vmem:[#allocation5 + $0x34] sm:$0xf]
        %v1014 = vld [vmem:[#allocation5 + $0x38] sm:$0xf]
        %v1015 = vld [vmem:[#allocation5 + $0x3c] sm:$0xf]
        %v1016 = vld [vmem:[%s293] sm:$0x1]
        %v1018 = vlaneseq
        %v1019 = vshrl.u32 %v1018, 7
        %v1020 = vsub.s32 0, %v1019
        %v1021 = vrot.slane %v1016, %v1020
        %v1039 = vunpack.c.l.b16 %v1000
        %v1040 = vunpack.c.l.b16 %v1001
        %v1041 = vunpack.c.l.b16 %v1002
        %v1042 = vunpack.c.l.b16 %v1003
        %v1043 = vunpack.c.l.b16 %v1004
        %v1044 = vunpack.c.l.b16 %v1005
        %v1045 = vunpack.c.l.b16 %v1006
        %v1046 = vunpack.c.l.b16 %v1007
        %v1047 = vunpack.c.l.b16 %v1008
        %v1048 = vunpack.c.l.b16 %v1009
        %v1049 = vunpack.c.l.b16 %v1010
        %v1050 = vunpack.c.l.b16 %v1011
        %v1051 = vunpack.c.l.b16 %v1012
        %v1052 = vunpack.c.l.b16 %v1013
        %v1053 = vunpack.c.l.b16 %v1014
        %v1054 = vunpack.c.l.b16 %v1015
        %v1055 = vpack.c.b16 %v1040, %v1039
        %v1056 = vpack.c.b16 %v1042, %v1041
        %v1057 = vpack.c.b16 %v1044, %v1043
        %v1058 = vpack.c.b16 %v1046, %v1045
        %v1059 = vpack.c.b16 %v1048, %v1047
        %v1060 = vpack.c.b16 %v1050, %v1049
        %v1061 = vpack.c.b16 %v1052, %v1051
        %v1062 = vpack.c.b16 %v1054, %v1053
        %1071 = vmatprep.subr.bf16.mxu0 0
        %1072 = vmatpush1.bf16.msra.mxu0 %v1062
        %1073 = vmatprep.subr.bf16.mxu0 0
        %1074 = vmatpush1.bf16.msra.mxu0 %v1061
        %1075 = vmatprep.subr.bf16.mxu0 0
        %1076 = vmatpush1.bf16.msra.mxu0 %v1060
        %1077 = vmatprep.subr.bf16.mxu0 0
        %1078 = vmatpush1.bf16.msra.mxu0 %v1059
        %1079 = vmatprep.subr.bf16.mxu0 0
        %1080 = vmatpush1.bf16.msra.mxu0 %v1058
        %1081 = vmatprep.subr.bf16.mxu0 0
        %1082 = vmatpush1.bf16.msra.mxu0 %v1057
        %1083 = vmatprep.subr.bf16.mxu0 0
        %1084 = vmatpush1.bf16.msra.mxu0 %v1056
        %1085 = vmatprep.subr.bf16.mxu0 0
        %1086 = vmatpush1.bf16.msra.mxu0 %v1055
        %1087 = vmatprep.subr.bf16.mxu0 0
        %1088 = vmatpush2.bf16.msra.mxu0 0
        %1089 = vmatprep.subr.bf16.mxu0 0
        %1090 = vmatpush2.bf16.msra.mxu0 0
        %1091 = vmatprep.subr.bf16.mxu0 0
        %1092 = vmatpush2.bf16.msra.mxu0 0
        %1093 = vmatprep.subr.bf16.mxu0 0
        %1094 = vmatpush2.bf16.msra.mxu0 0
        %1095 = vmatprep.subr.bf16.mxu0 0
        %1096 = vmatpush2.bf16.msra.mxu0 0
        %1097 = vmatprep.subr.bf16.mxu0 0
        %1098 = vmatpush2.bf16.msra.mxu0 0
        %1099 = vmatprep.subr.bf16.mxu0 0
        %1100 = vmatpush2.bf16.msra.mxu0 0
        %1101 = vmatprep.subr.bf16.mxu0 0
        %1102 = vmatpush2.bf16.msra.mxu0 0
        %1103 = vmatprep.mubr.bf16.mxu0 0
        %1104 = vmatmul.mubr.bf16.gmra.mxu0 %v984
        %v1105 = vpop.f32.mrf.mxu0
        %v1106 = vadd.f32 %v1021, %v1105
        %v1107 = vpop.f32.mrf.mxu0
        %v1108 = vpop.f32.mrf.mxu0
        %v1109 = vadd.f32 %v1021, %v1108
        %v1110 = vpop.f32.mrf.mxu0
        %1111 = vmatprep.mubr.bf16.mxu0 0
        %1112 = vmatmul.mubr.bf16.gmra.mxu0 %v985
        %v1113 = vpop.f32.mrf.mxu0
        %v1114 = vadd.f32 %v1021, %v1113
        %v1115 = vpop.f32.mrf.mxu0
        %v1116 = vpop.f32.mrf.mxu0
        %v1117 = vadd.f32 %v1021, %v1116
        %v1118 = vpop.f32.mrf.mxu0
        %1119 = vmatprep.mubr.bf16.mxu0 0
        %1120 = vmatmul.mubr.bf16.gmra.mxu0 %v986
        %v1121 = vpop.f32.mrf.mxu0
        %v1122 = vadd.f32 %v1021, %v1121
        %v1123 = vpop.f32.mrf.mxu0
        %v1124 = vpop.f32.mrf.mxu0
        %v1125 = vadd.f32 %v1021, %v1124
        %v1126 = vpop.f32.mrf.mxu0
        %1127 = vmatprep.mubr.bf16.mxu0 0
        %1128 = vmatmul.mubr.bf16.gmra.mxu0 %v987
        %v1129 = vpop.f32.mrf.mxu0
        %v1130 = vadd.f32 %v1021, %v1129
        %v1131 = vpop.f32.mrf.mxu0
        %v1132 = vpop.f32.mrf.mxu0
        %v1133 = vadd.f32 %v1021, %v1132
        %v1134 = vpop.f32.mrf.mxu0
        %1135 = vmatprep.mubr.bf16.mxu0 0
        %1136 = vmatmul.mubr.bf16.gmra.mxu0 %v988
        %v1137 = vpop.f32.mrf.mxu0
        %v1138 = vadd.f32 %v1021, %v1137
        %v1139 = vpop.f32.mrf.mxu0
        %v1140 = vpop.f32.mrf.mxu0
        %v1141 = vadd.f32 %v1021, %v1140
        %v1142 = vpop.f32.mrf.mxu0
        %1143 = vmatprep.mubr.bf16.mxu0 0
        %1144 = vmatmul.mubr.bf16.gmra.mxu0 %v989
        %v1145 = vpop.f32.mrf.mxu0
        %v1146 = vadd.f32 %v1021, %v1145
        %v1147 = vpop.f32.mrf.mxu0
        %v1148 = vpop.f32.mrf.mxu0
        %v1149 = vadd.f32 %v1021, %v1148
        %v1150 = vpop.f32.mrf.mxu0
        %1151 = vmatprep.mubr.bf16.mxu0 0
        %1152 = vmatmul.mubr.bf16.gmra.mxu0 %v990
        %v1153 = vpop.f32.mrf.mxu0
        %v1154 = vadd.f32 %v1021, %v1153
        %v1155 = vpop.f32.mrf.mxu0
        %v1156 = vpop.f32.mrf.mxu0
        %v1157 = vadd.f32 %v1021, %v1156
        %v1158 = vpop.f32.mrf.mxu0
        %1159 = vmatprep.mubr.bf16.mxu0 0
        %1160 = vmatmul.mubr.bf16.gmra.mxu0 %v991
        %v1161 = vpop.f32.mrf.mxu0
        %v1162 = vadd.f32 %v1021, %v1161
        %v1163 = vpop.f32.mrf.mxu0
        %v1164 = vpop.f32.mrf.mxu0
        %v1165 = vadd.f32 %v1021, %v1164
        %v1166 = vpop.f32.mrf.mxu0
        %1167 = vmatprep.mubr.bf16.mxu0 0
        %1168 = vmatmul.mubr.bf16.gmra.mxu0 %v992
        %v1169 = vpop.f32.mrf.mxu0
        %v1170 = vadd.f32 %v1021, %v1169
        %v1171 = vpop.f32.mrf.mxu0
        %v1172 = vpop.f32.mrf.mxu0
        %v1173 = vadd.f32 %v1021, %v1172
        %v1174 = vpop.f32.mrf.mxu0
        %1175 = vmatprep.mubr.bf16.mxu0 0
        %1176 = vmatmul.mubr.bf16.gmra.mxu0 %v993
        %v1177 = vpop.f32.mrf.mxu0
        %v1178 = vadd.f32 %v1021, %v1177
        %v1179 = vpop.f32.mrf.mxu0
        %v1180 = vpop.f32.mrf.mxu0
        %v1181 = vadd.f32 %v1021, %v1180
        %v1182 = vpop.f32.mrf.mxu0
        %1183 = vmatprep.mubr.bf16.mxu0 0
        %1184 = vmatmul.mubr.bf16.gmra.mxu0 %v994
        %v1185 = vpop.f32.mrf.mxu0
        %v1186 = vadd.f32 %v1021, %v1185
        %v1187 = vpop.f32.mrf.mxu0
        %v1188 = vpop.f32.mrf.mxu0
        %v1189 = vadd.f32 %v1021, %v1188
        %v1190 = vpop.f32.mrf.mxu0
        %1191 = vmatprep.mubr.bf16.mxu0 0
        %1192 = vmatmul.mubr.bf16.gmra.mxu0 %v995
        %v1193 = vpop.f32.mrf.mxu0
        %v1194 = vadd.f32 %v1021, %v1193
        %v1195 = vpop.f32.mrf.mxu0
        %v1196 = vpop.f32.mrf.mxu0
        %v1197 = vadd.f32 %v1021, %v1196
        %v1198 = vpop.f32.mrf.mxu0
        %1199 = vmatprep.mubr.bf16.mxu0 0
        %1200 = vmatmul.mubr.bf16.gmra.mxu0 %v996
        %v1201 = vpop.f32.mrf.mxu0
        %v1202 = vadd.f32 %v1021, %v1201
        %v1203 = vpop.f32.mrf.mxu0
        %v1204 = vpop.f32.mrf.mxu0
        %v1205 = vadd.f32 %v1021, %v1204
        %v1206 = vpop.f32.mrf.mxu0
        %1207 = vmatprep.mubr.bf16.mxu0 0
        %1208 = vmatmul.mubr.bf16.gmra.mxu0 %v997
        %v1209 = vpop.f32.mrf.mxu0
        %v1210 = vadd.f32 %v1021, %v1209
        %v1211 = vpop.f32.mrf.mxu0
        %v1212 = vpop.f32.mrf.mxu0
        %v1213 = vadd.f32 %v1021, %v1212
        %v1214 = vpop.f32.mrf.mxu0
        %1215 = vmatprep.mubr.bf16.mxu0 0
        %1216 = vmatmul.mubr.bf16.gmra.mxu0 %v998
        %v1217 = vpop.f32.mrf.mxu0
        %v1218 = vadd.f32 %v1021, %v1217
        %v1219 = vpop.f32.mrf.mxu0
        %v1220 = vpop.f32.mrf.mxu0
        %v1221 = vadd.f32 %v1021, %v1220
        %v1222 = vpop.f32.mrf.mxu0
        %1223 = vmatprep.mubr.bf16.mxu0 0
        %1224 = vmatmul.mubr.bf16.gmra.mxu0 %v999
        %v1225 = vpop.f32.mrf.mxu0
        %v1226 = vadd.f32 %v1021, %v1225
        %v1227 = vpop.f32.mrf.mxu0
        %v1228 = vpop.f32.mrf.mxu0
        %v1229 = vadd.f32 %v1021, %v1228
        %v1230 = vpop.f32.mrf.mxu0
        %1231 = vdwg.mxu0
        %v1232 = vadd.f32 %v296, %v1106
        %v1233 = vadd.f32 %v297, %v1109
        %v1234 = vadd.f32 %v298, %v1114
        %v1235 = vadd.f32 %v299, %v1117
        %v1236 = vadd.f32 %v300, %v1122
        %v1237 = vadd.f32 %v301, %v1125
        %v1238 = vadd.f32 %v302, %v1130
        %v1239 = vadd.f32 %v303, %v1133
        %v1240 = vadd.f32 %v304, %v1138
        %v1241 = vadd.f32 %v305, %v1141
        %v1242 = vadd.f32 %v306, %v1146
        %v1243 = vadd.f32 %v307, %v1149
        %v1244 = vadd.f32 %v308, %v1154
        %v1245 = vadd.f32 %v309, %v1157
        %v1246 = vadd.f32 %v310, %v1162
        %v1247 = vadd.f32 %v311, %v1165
        %v1248 = vadd.f32 %v312, %v1170
        %v1249 = vadd.f32 %v313, %v1173
        %v1250 = vadd.f32 %v314, %v1178
        %v1251 = vadd.f32 %v315, %v1181
        %v1252 = vadd.f32 %v316, %v1186
        %v1253 = vadd.f32 %v317, %v1189
        %v1254 = vadd.f32 %v318, %v1194
        %v1255 = vadd.f32 %v319, %v1197
        %v1256 = vadd.f32 %v320, %v1202
        %v1257 = vadd.f32 %v321, %v1205
        %v1258 = vadd.f32 %v322, %v1210
        %v1259 = vadd.f32 %v323, %v1213
        %v1260 = vadd.f32 %v324, %v1218
        %v1261 = vadd.f32 %v325, %v1221
        %v1262 = vadd.f32 %v326, %v1226
        %v1263 = vadd.f32 %v327, %v1229
        %1264 = vst [vmem:[%s289] sm:$0xff] %v1232
        %1265 = vst [vmem:[%s289 + $0x8] sm:$0xff] %v1233
        %1266 = vst [vmem:[%s289 + $0x10] sm:$0xff] %v1234
        %1267 = vst [vmem:[%s289 + $0x18] sm:$0xff] %v1235
        %1268 = vst [vmem:[%s289 + $0x20] sm:$0xff] %v1236
        %1269 = vst [vmem:[%s289 + $0x28] sm:$0xff] %v1237
        %1270 = vst [vmem:[%s289 + $0x30] sm:$0xff] %v1238
        %1271 = vst [vmem:[%s289 + $0x38] sm:$0xff] %v1239
        %1272 = vst [vmem:[%s289 + $0x40] sm:$0xff] %v1240
        %1273 = vst [vmem:[%s289 + $0x48] sm:$0xff] %v1241
        %1274 = vst [vmem:[%s289 + $0x50] sm:$0xff] %v1242
        %1275 = vst [vmem:[%s289 + $0x58] sm:$0xff] %v1243
        %1276 = vst [vmem:[%s289 + $0x60] sm:$0xff] %v1244
        %1277 = vst [vmem:[%s289 + $0x68] sm:$0xff] %v1245
        %1278 = vst [vmem:[%s289 + $0x70] sm:$0xff] %v1246
        %1279 = vst [vmem:[%s289 + $0x78] sm:$0xff] %v1247
        %1280 = vst [vmem:[%s289 + $0x80] sm:$0xff] %v1248
        %1281 = vst [vmem:[%s289 + $0x88] sm:$0xff] %v1249
        %1282 = vst [vmem:[%s289 + $0x90] sm:$0xff] %v1250
        %1283 = vst [vmem:[%s289 + $0x98] sm:$0xff] %v1251
        %1284 = vst [vmem:[%s289 + $0xa0] sm:$0xff] %v1252
        %1285 = vst [vmem:[%s289 + $0xa8] sm:$0xff] %v1253
        %1286 = vst [vmem:[%s289 + $0xb0] sm:$0xff] %v1254
        %1287 = vst [vmem:[%s289 + $0xb8] sm:$0xff] %v1255
        %1288 = vst [vmem:[%s289 + $0xc0] sm:$0xff] %v1256
        %1289 = vst [vmem:[%s289 + $0xc8] sm:$0xff] %v1257
        %1290 = vst [vmem:[%s289 + $0xd0] sm:$0xff] %v1258
        %1291 = vst [vmem:[%s289 + $0xd8] sm:$0xff] %v1259
        %1292 = vst [vmem:[%s289 + $0xe0] sm:$0xff] %v1260
        %1293 = vst [vmem:[%s289 + $0xe8] sm:$0xff] %v1261
        %1294 = vst [vmem:[%s289 + $0xf0] sm:$0xff] %v1262
        %1295 = vst [vmem:[%s289 + $0xf8] sm:$0xff] %v1263
        %s1296 = sand.u32 %s165, 1
        %s1297 = scalar_lea.sflag [#allocation4], %s1296
        %s1298 = sand.u32 %s165, 1
        %s1299 = smul.addr %s1298, 256
        %s1300 = scalar_lea.vmem [#allocation7], %s1299
        // Predicated region
        $region49: #{tpu_custom_call.1} parent=39 // pred_check
          %p1301 = pneg %p175
        $region50: #{tpu_custom_call.1} parent=39 // pred_check_branch
          %1303 = sbr.rel (%p1301) target = $region52
        $region51: #{tpu_custom_call.1} parent=39 // pred_region
          %s1304 = smul.u32 32, %s28
          %s1306 = ssub.s32 4096, 4096
          %1307 = vsyncadd %s1297, %s1306
          %s1308 = sadd.s32 %s27, %s1304
          %s1309 = smul.addr %s1308, 128
          %s1310 = scalar_lea.hbm %s5, %s1309
          %s1311 = sshll.u32 %s1300, 4
          %s1312 = int_to_ptr.vmem [resolvable:$true] %s1311
          %1317 = dma.vmem_to_hbm [thread:$0]  %s1312, 4096, %s1310, %s1297, 128, 128, 8
        $region52: #{tpu_custom_call.1} parent=39 // pred_fallthru
          _
      $region40: #{tpu_custom_call.1} parent=5 // pred_fallthru
        _
      %p1318 = scmp.le.s32.totalorder 2, %s18
      // Predicated region
      $region53: #{tpu_custom_call.1} parent=5 // pred_check
        %p1319 = pneg %p1318
      $region54: #{tpu_custom_call.1} parent=5 // pred_check_branch
        %1321 = sbr.rel (%p1319) target = $region56
      $region55: #{tpu_custom_call.1} parent=5 // pred_region
        %s1322 = ssub.s32 %s18, 2
        // Predicated region
        $region57: #{tpu_custom_call.1} parent=55 // pred_check
          %p1323 = pneg %p181
        $region58: #{tpu_custom_call.1} parent=55 // pred_check_branch
          %1325 = sbr.rel (%p1323) target = $region60
        $region59: #{tpu_custom_call.1} parent=55 // pred_region
          %s1326 = sand.u32 %s166, 1
          %s1327 = scalar_lea.sflag [#allocation4], %s1326
          %s1328 = sand.u32 %s166, 1
          %s1329 = smul.addr %s1328, 256
          %s1330 = scalar_lea.vmem [#allocation7], %s1329
          %1331 = dma.done %s1327, 4096
        $region60: #{tpu_custom_call.1} parent=55 // pred_fallthru
          _
      $region56: #{tpu_custom_call.1} parent=5 // pred_fallthru
        _
    $region6: #{tpu_custom_call.1} parent=1 // loop_footer
      %s22 = sadd.s32 1, %s18
    $region7: #{tpu_custom_call.1} parent=1 // loop_footer_branch
      %17 = sbr.rel target = $region3
    $region8: #{tpu_custom_call.1} parent=1 // loop_exit
      _
    %1332 = vsyncpa [#allocation3], 1
    %s1333 = scalar_lea.sflag [#allocation3], 1
    %1334 = vsyncpa %s1333, 1
    %1335 = vsyncpa [#allocation6], 1
    %1336 = vsyncpa [#allocation4], 1
    %s1337 = scalar_lea.sflag [#allocation4], 1
    %1338 = vsyncpa %s1337, 1

</llo_original>
